<compile_context>
chip_gen: v5e
topology: v5e:2x2
jax: 0.10.0
libtpu: 0.0.40
codegen_flags: <defaults>
</compile_context>

<pallas_src>
import numpy as np
import jax
import jax.numpy as jnp
from jax.experimental import pallas as pl
from jax.experimental.pallas import tpu as pltpu


# ---------------------------------------------------------------------------
# Kernel 1: detector-axis conv (one-shot, tiny) -> bf16 filtered sinogram
# ---------------------------------------------------------------------------
def make_conv_kernel(D, K):
    def kernel(w_ref, xp_ref, y_ref):
        # w_ref : (K,)          f32  SMEM   filter taps
        # xp_ref: (N, A, D+K-1) f32  VMEM   left-padded sinogram
        # y_ref : (N, A, D)     bf16 VMEM   filtered sinogram (future matmul LHS)
        # Hoisted out of the streamed backprojection loop (was recomputed per
        # HW tile before); each tap is read exactly once.  Unaligned lane
        # slices are fine here: this runs once on a ~100 KB array.
        acc = w_ref[0] * xp_ref[:, :, 0:D]
        for k in range(1, K):                       # K small -> static unroll
            acc = acc + w_ref[k] * xp_ref[:, :, k:k + D]
        y_ref[...] = acc.astype(y_ref.dtype)
    return kernel


# ---------------------------------------------------------------------------
# Kernel 2: streamed backprojection matmul (pure DMA + dequant + MXU)
# ---------------------------------------------------------------------------
def make_backproj_kernel(n_chunks, chunk):
    def kernel(y_ref, bpt_ref, scale_ref, out_ref):
        # y_ref    : (N, A_t*D)           bf16       filtered-sinogram block (LHS)
        # bpt_ref  : (1, A_t*D, hw_tile)  int8/bf16  pre-blocked operator block
        # scale_ref: (1, hw_tile)         f32        per-pixel dequant scale
        # out_ref  : (N, hw_tile)         f32        output tile (revisited over r)
        r = pl.program_id(1)

        @pl.when(r == 0)
        def _init():
            out_ref[...] = jnp.zeros_like(out_ref)

        y = y_ref[...]
        # Dequantize + matmul in lane chunks so the widened bf16 operand stays
        # small (bounds VMEM, lets the streamed int8 block grow).  The
        # int8 -> f32 -> bf16 hop keeps the convert on a universally supported
        # lowering path and fuses per-vreg.
        for c in range(n_chunks):                   # static unroll (<= 4 chunks)
            lo = c * chunk
            blk = bpt_ref[0, :, lo:lo + chunk].astype(jnp.float32).astype(jnp.bfloat16)
            out_ref[:, lo:lo + chunk] += jnp.dot(
                y, blk, preferred_element_type=jnp.float32)

        @pl.when(r == pl.num_programs(1) - 1)
        def _finalize():
            # Per-output-pixel dequantization scale applied once at the end.
            out_ref[...] = out_ref[...] * scale_ref[...]
    return kernel


# ---------------------------------------------------------------------------
# Host-side: dense adjoint-ray-transform operator, (A*D, H*W) float32
# ---------------------------------------------------------------------------
def build_backprojection_operator(H, W, A, D, img_extent=1.0,
                                  det_min=-2.0, det_max=2.0):
    dtheta = np.pi / A
    thetas = (np.arange(A) + 0.5) * dtheta                  # midpoints of [0, pi)
    xs = -img_extent + (np.arange(W) + 0.5) * (2.0 * img_extent / W)
    ys = -img_extent + (np.arange(H) + 0.5) * (2.0 * img_extent / H)
    det_cell = (det_max - det_min) / D
    det0 = det_min + 0.5 * det_cell

    YY, XX = np.meshgrid(ys, xs, indexing="ij")             # pixel p = h*W + w
    px, py = XX.ravel(), YY.ravel()
    HW = H * W
    bpt = np.zeros((A, D, HW), np.float32)
    pix = np.arange(HW)
    for a in range(A):
        t = px * np.cos(thetas[a]) + py * np.sin(thetas[a])
        u = (t - det0) / det_cell
        i0 = np.floor(u).astype(np.int64)
        frac = (u - i0).astype(np.float32)
        for idx, wgt in ((i0, 1.0 - frac), (i0 + 1, frac)):
            valid = (idx >= 0) & (idx < D)
            np.add.at(bpt[a], (idx[valid], pix[valid]),
                      (wgt[valid] * dtheta).astype(np.float32))
    # TODO(synk): bpt is only ~2/D dense (linear interp touches 2 bins/pixel);
    # a gather/band formulation would shrink the HBM stream ~D/2x further.
    return bpt.reshape(A * D, HW)


def prepare_operator(bpt_flat, A, D, HW, *, a_tile, hw_tile, op_dtype=jnp.int8):
    """Quantize (per output pixel) + pre-block the operator on the host.

    Returns:
      blocks: (n_hw*n_ab, a_tile*D, hw_tile) op_dtype, hw-major / angle-block-
              minor, so every streamed block is contiguous in HBM and the
              innermost (reduction) grid axis reads consecutive HBM.
      scale : (1, HW) f32 per-pixel dequantization scale (ones if no quant).
      eff   : (A*D, HW) f32 effective (dequantized) operator, for references.
    """
    bpt = np.asarray(bpt_flat, np.float32)
    assert bpt.shape == (A * D, HW)
    assert A % a_tile == 0 and HW % hw_tile == 0
    n_hw, n_ab = HW // hw_tile, A // a_tile

    if jnp.dtype(op_dtype) == jnp.dtype(jnp.int8):
        absmax = np.maximum(np.abs(bpt).max(axis=0, keepdims=True), 1e-12)
        scale = (absmax / 127.0).astype(np.float32)          # (1, HW)
        q = np.clip(np.rint(bpt / scale), -127, 127).astype(np.int8)
        eff = q.astype(np.float32) * scale
        stored = q
    else:                                                    # bf16 fallback
        scale = np.ones((1, HW), np.float32)
        stored = bpt
        eff = np.asarray(jnp.asarray(bpt).astype(jnp.bfloat16).astype(jnp.float32))

    blocks = stored.reshape(n_ab, a_tile * D, n_hw, hw_tile).transpose(2, 0, 1, 3)
    blocks = np.ascontiguousarray(blocks).reshape(n_hw * n_ab, a_tile * D, hw_tile)
    return jnp.asarray(blocks).astype(op_dtype), jnp.asarray(scale), eff


# ---------------------------------------------------------------------------
# Tile / VMEM heuristics (per generation)
# ---------------------------------------------------------------------------
def _pick_tile(total, cap, align):
    """Largest divisor of `total` that is a multiple of `align` and <= cap."""
    best = None
    for t in range(align, min(total, cap) + 1, align):
        if total % t == 0:
            best = t
    return best if best is not None else total


def _vmem_limit_bytes():
    """Usable VMEM budget for this generation, leaving compiler headroom."""
    try:
        cap = int(pltpu.get_tpu_info().vmem_capacity_bytes)
    except Exception:
        cap = 64 << 20                      # conservative: v7x per-TensorCore
    # 128 MiB parts (v5e/v6e) -> ~100 MiB usable; 64 MiB parts (v7x) -> ~52 MiB.
    return (100 << 20) if cap >= (100 << 20) else (52 << 20)


def choose_tiles(A, D, HW, op_itemsize, *, dq_chunk_cap=1024, hw_tile_cap=4096):
    """Biggest streamed block that fits this generation's VMEM budget.
    (Production A=50, D=256, HW=16384, int8: v5e/v6e -> a_tile=25 @ hw_tile=4096,
    ~25 MiB blocks, 8 grid steps; v7x -> a_tile=10, ~10 MiB blocks, 20 steps.)"""
    limit = _vmem_limit_bytes()
    hw_tile = _pick_tile(HW, hw_tile_cap, 128)      # lane-dense output tiles
    chunk = _pick_tile(hw_tile, min(hw_tile, dq_chunk_cap), 128)
    budget = limit - (12 << 20)                     # out/LHS/scale + compiler scratch
    a_tile = 1
    for t in range(1, A + 1):
        if A % t:
            continue
        blk = t * D * hw_tile * op_itemsize         # streamed operator block
        dq = t * D * chunk * 6                      # widened dequant chunk (margin)
        if 2 * blk + dq <= budget:
            a_tile = t
    return hw_tile, a_tile, limit


# ---------------------------------------------------------------------------
# Wrapper
# ---------------------------------------------------------------------------
def nnfbp_forward(x, conv_w, bpt_blocks, bpt_scale, H, W, *,
                  a_tile, hw_tile, dq_chunk=1024, vmem_limit=None):
    """x: (N,1,A,D) f32 sinogram; conv_w: (1,1,1,K) Conv2d weight;
    bpt_blocks/bpt_scale from prepare_operator with the same a_tile/hw_tile."""
    N, C, A, D = x.shape
    assert C == 1
    K = conv_w.shape[-1]
    HW = H * W
    assert HW % hw_tile == 0 and A % a_tile == 0
    n_hw, n_ab = HW // hw_tile, A // a_tile
    assert bpt_blocks.shape == (n_hw * n_ab, a_tile * D, hw_tile)
    assert bpt_scale.shape == (1, HW)
    assert hw_tile % 128 == 0 or hw_tile == HW
    # 128-alignment also satisfies bf16 (16) / int8 (32) second-minor packing.
    assert (a_tile * D) % 128 == 0 or a_tile == A

    w = conv_w.reshape(K).astype(jnp.float32)
    xp = jnp.pad(x[:, 0].astype(jnp.float32), ((0, 0), (0, 0), (K - 1, 0)))

    # ---- 1) detector conv: one-shot tiny kernel (hoisted out of the stream) ----
    y3 = pl.pallas_call(
        make_conv_kernel(D, K),
        out_shape=jax.ShapeDtypeStruct((N, A, D), jnp.bfloat16),
        in_specs=[pl.BlockSpec(memory_space=pltpu.MemorySpace.SMEM),    # taps
                  pl.BlockSpec(memory_space=pltpu.MemorySpace.VMEM)],   # sinogram
        out_specs=pl.BlockSpec(memory_space=pltpu.MemorySpace.VMEM),
    )(w, xp)
    y_flat = y3.reshape(N, A * D)        # angle-major, detector-minor matmul LHS

    # ---- 2) streamed backprojection: ONE long-K matmul per grid step ----------
    chunk = _pick_tile(hw_tile, min(hw_tile, dq_chunk), 128)
    n_chunks = hw_tile // chunk
    op_itemsize = int(jnp.dtype(bpt_blocks.dtype).itemsize)

    blk_bytes = a_tile * D * hw_tile * op_itemsize
    vmem_est = (2 * blk_bytes                 # double-buffered operator stream
                + a_tile * D * chunk * 2      # widened bf16 dequant chunk
                + 2 * N * a_tile * D * 2      # double-buffered LHS block
                + 2 * N * hw_tile * 4         # output tile
                + 2 * hw_tile * 4             # scale row
                + (6 << 20))                  # compiler scratch headroom
    if vmem_limit is None:
        vmem_limit = int(min(max(vmem_est, 16 << 20), _vmem_limit_bytes()))

    cost = pl.CostEstimate(
        flops=2 * N * (A * D) * HW,
        transcendentals=0,
        bytes_accessed=(A * D * HW * op_itemsize + n_hw * N * A * D * 2
                        + N * HW * 4 + HW * 4),
    )

    out_flat = pl.pallas_call(
        make_backproj_kernel(n_chunks, chunk),
        out_shape=jax.ShapeDtypeStruct((N, HW), jnp.float32),
        grid_spec=pltpu.PrefetchScalarGridSpec(
            num_scalar_prefetch=0,
            grid=(n_hw, n_ab),                 # HW parallel, angle reduction last
            in_specs=[
                pl.BlockSpec((N, a_tile * D), lambda hw, r: (0, r)),        # LHS
                pl.BlockSpec((1, a_tile * D, hw_tile),                       # operator
                             lambda hw, r: (hw * n_ab + r, 0, 0)),
                pl.BlockSpec((1, hw_tile), lambda hw, r: (0, hw)),           # scale
            ],
            out_specs=pl.BlockSpec((N, hw_tile), lambda hw, r: (0, hw)),
        ),
        compiler_params=pltpu.CompilerParams(
            dimension_semantics=("parallel", "arbitrary"),
            vmem_limit_bytes=vmem_limit,
        ),
        cost_estimate=cost,
    )(y_flat, bpt_blocks, bpt_scale)

    return out_flat.reshape(N, 1, H, W)


# ---------------------------------------------------------------------------
# NumPy reference of the same math (same bf16 LHS rounding, same effective
# quantized operator), float64 accumulation — for the sanity check.
# ---------------------------------------------------------------------------
def nnfbp_reference(x, conv_w, bpt_eff_flat, H, W):
    x = np.asarray(x, np.float32)
    w = np.asarray(conv_w, np.float32).reshape(-1)
    K = w.shape[0]
    N, _, A, D = x.shape
    xp = np.pad(x[:, 0], ((0, 0), (0, 0), (K - 1, 0)))
    y = w[0] * xp[:, :, 0:D]
    for k in range(1, K):
        y = y + w[k] * xp[:, :, k:k + D]
    y = np.asarray(jnp.asarray(y).astype(jnp.bfloat16).astype(jnp.float32))
    out = y.reshape(N, A * D).astype(np.float64) @ np.asarray(bpt_eff_flat, np.float64)
    return out.reshape(N, 1, H, W).astype(np.float32)


if __name__ == "__main__":
    # Small shapes consistent with the module (original: A=50, D=256, img 128x128)
    N, A, D = 2, 8, 32          # batch, angles, detector bins
    H = W = 16                  # reconstruction image size
    K = 11                      # fbp_ker_size
    HW = H * W

    key = jax.random.PRNGKey(0)
    kx, kw = jax.random.split(key)
    x = jax.random.normal(kx, (N, 1, A, D), dtype=jnp.float32)
    # Conv2d(1, 1, kernel_size=(1, K), bias=False) weight: (1, 1, 1, K)
    conv_w = jax.random.normal(kw, (1, 1, 1, K), dtype=jnp.float32) / np.sqrt(K)

    bpt_flat = build_backprojection_operator(H, W, A, D)       # (A*D, HW) f32

    # Small tiles so the toy run exercises both grid axes (2 x 2 grid); for
    # production shapes use: hw_tile, a_tile, _ = choose_tiles(A, D, HW, 1).
    hw_tile, a_tile = 128, 4
    bpt_blocks, bpt_scale, bpt_eff = prepare_operator(
        bpt_flat, A, D, HW, a_tile=a_tile, hw_tile=hw_tile, op_dtype=jnp.int8)

    out = nnfbp_forward(x, conv_w, bpt_blocks, bpt_scale, H, W,
                        a_tile=a_tile, hw_tile=hw_tile)
    out = jax.block_until_ready(out)

    ref = nnfbp_reference(x, conv_w, bpt_eff, H, W)
    np.testing.assert_allclose(np.asarray(out), ref, rtol=5e-3, atol=5e-3)

    print("KERNEL_OK")
</pallas_src>

<mosaic_0001>
module attributes {stable_mosaic.version = 11 : i64} {
  func.func @kernel(%arg0: memref<11xf32, #tpu.memory_space<smem>>, %arg1: memref<2x8x42xf32, #tpu.memory_space<vmem>>, %arg2: memref<2x8x32xbf16, #tpu.memory_space<vmem>>) attributes {dimension_semantics = [], scalar_prefetch = 0 : i64, scratch_operands = 0 : i64, tpu.core_type = #tpu.core_type<tc>} {
    %c0 = arith.constant 0 : index
    %0 = memref.load %arg0[%c0] : memref<11xf32, #tpu.memory_space<smem>>
    %c0_0 = arith.constant 0 : index
    %c0_1 = arith.constant 0 : index
    %c0_2 = arith.constant 0 : index
    %1 = vector.load %arg1[%c0_0, %c0_1, %c0_2] : memref<2x8x42xf32, #tpu.memory_space<vmem>>, vector<2x8x32xf32>
    %2 = vector.broadcast %0 : f32 to vector<2x8x32xf32>
    %3 = arith.mulf %2, %1 : vector<2x8x32xf32>
    %c1 = arith.constant 1 : index
    %4 = memref.load %arg0[%c1] : memref<11xf32, #tpu.memory_space<smem>>
    %c0_3 = arith.constant 0 : index
    %c0_4 = arith.constant 0 : index
    %c1_5 = arith.constant 1 : index
    %5 = vector.load %arg1[%c0_3, %c0_4, %c1_5] : memref<2x8x42xf32, #tpu.memory_space<vmem>>, vector<2x8x32xf32>
    %6 = vector.broadcast %4 : f32 to vector<2x8x32xf32>
    %7 = arith.mulf %6, %5 : vector<2x8x32xf32>
    %8 = arith.addf %3, %7 : vector<2x8x32xf32>
    %c2 = arith.constant 2 : index
    %9 = memref.load %arg0[%c2] : memref<11xf32, #tpu.memory_space<smem>>
    %c0_6 = arith.constant 0 : index
    %c0_7 = arith.constant 0 : index
    %c2_8 = arith.constant 2 : index
    %10 = vector.load %arg1[%c0_6, %c0_7, %c2_8] : memref<2x8x42xf32, #tpu.memory_space<vmem>>, vector<2x8x32xf32>
    %11 = vector.broadcast %9 : f32 to vector<2x8x32xf32>
    %12 = arith.mulf %11, %10 : vector<2x8x32xf32>
    %13 = arith.addf %8, %12 : vector<2x8x32xf32>
    %c3 = arith.constant 3 : index
    %14 = memref.load %arg0[%c3] : memref<11xf32, #tpu.memory_space<smem>>
    %c0_9 = arith.constant 0 : index
    %c0_10 = arith.constant 0 : index
    %c3_11 = arith.constant 3 : index
    %15 = vector.load %arg1[%c0_9, %c0_10, %c3_11] : memref<2x8x42xf32, #tpu.memory_space<vmem>>, vector<2x8x32xf32>
    %16 = vector.broadcast %14 : f32 to vector<2x8x32xf32>
    %17 = arith.mulf %16, %15 : vector<2x8x32xf32>
    %18 = arith.addf %13, %17 : vector<2x8x32xf32>
    %c4 = arith.constant 4 : index
    %19 = memref.load %arg0[%c4] : memref<11xf32, #tpu.memory_space<smem>>
    %c0_12 = arith.constant 0 : index
    %c0_13 = arith.constant 0 : index
    %c4_14 = arith.constant 4 : index
    %20 = vector.load %arg1[%c0_12, %c0_13, %c4_14] : memref<2x8x42xf32, #tpu.memory_space<vmem>>, vector<2x8x32xf32>
    %21 = vector.broadcast %19 : f32 to vector<2x8x32xf32>
    %22 = arith.mulf %21, %20 : vector<2x8x32xf32>
    %23 = arith.addf %18, %22 : vector<2x8x32xf32>
    %c5 = arith.constant 5 : index
    %24 = memref.load %arg0[%c5] : memref<11xf32, #tpu.memory_space<smem>>
    %c0_15 = arith.constant 0 : index
    %c0_16 = arith.constant 0 : index
    %c5_17 = arith.constant 5 : index
    %25 = vector.load %arg1[%c0_15, %c0_16, %c5_17] : memref<2x8x42xf32, #tpu.memory_space<vmem>>, vector<2x8x32xf32>
    %26 = vector.broadcast %24 : f32 to vector<2x8x32xf32>
    %27 = arith.mulf %26, %25 : vector<2x8x32xf32>
    %28 = arith.addf %23, %27 : vector<2x8x32xf32>
    %c6 = arith.constant 6 : index
    %29 = memref.load %arg0[%c6] : memref<11xf32, #tpu.memory_space<smem>>
    %c0_18 = arith.constant 0 : index
    %c0_19 = arith.constant 0 : index
    %c6_20 = arith.constant 6 : index
    %30 = vector.load %arg1[%c0_18, %c0_19, %c6_20] : memref<2x8x42xf32, #tpu.memory_space<vmem>>, vector<2x8x32xf32>
    %31 = vector.broadcast %29 : f32 to vector<2x8x32xf32>
    %32 = arith.mulf %31, %30 : vector<2x8x32xf32>
    %33 = arith.addf %28, %32 : vector<2x8x32xf32>
    %c7 = arith.constant 7 : index
    %34 = memref.load %arg0[%c7] : memref<11xf32, #tpu.memory_space<smem>>
    %c0_21 = arith.constant 0 : index
    %c0_22 = arith.constant 0 : index
    %c7_23 = arith.constant 7 : index
    %35 = vector.load %arg1[%c0_21, %c0_22, %c7_23] : memref<2x8x42xf32, #tpu.memory_space<vmem>>, vector<2x8x32xf32>
    %36 = vector.broadcast %34 : f32 to vector<2x8x32xf32>
    %37 = arith.mulf %36, %35 : vector<2x8x32xf32>
    %38 = arith.addf %33, %37 : vector<2x8x32xf32>
    %c8 = arith.constant 8 : index
    %39 = memref.load %arg0[%c8] : memref<11xf32, #tpu.memory_space<smem>>
    %c0_24 = arith.constant 0 : index
    %c0_25 = arith.constant 0 : index
    %c8_26 = arith.constant 8 : index
    %40 = vector.load %arg1[%c0_24, %c0_25, %c8_26] : memref<2x8x42xf32, #tpu.memory_space<vmem>>, vector<2x8x32xf32>
    %41 = vector.broadcast %39 : f32 to vector<2x8x32xf32>
    %42 = arith.mulf %41, %40 : vector<2x8x32xf32>
    %43 = arith.addf %38, %42 : vector<2x8x32xf32>
    %c9 = arith.constant 9 : index
    %44 = memref.load %arg0[%c9] : memref<11xf32, #tpu.memory_space<smem>>
    %c0_27 = arith.constant 0 : index
    %c0_28 = arith.constant 0 : index
    %c9_29 = arith.constant 9 : index
    %45 = vector.load %arg1[%c0_27, %c0_28, %c9_29] : memref<2x8x42xf32, #tpu.memory_space<vmem>>, vector<2x8x32xf32>
    %46 = vector.broadcast %44 : f32 to vector<2x8x32xf32>
    %47 = arith.mulf %46, %45 : vector<2x8x32xf32>
    %48 = arith.addf %43, %47 : vector<2x8x32xf32>
    %c10 = arith.constant 10 : index
    %49 = memref.load %arg0[%c10] : memref<11xf32, #tpu.memory_space<smem>>
    %c0_30 = arith.constant 0 : index
    %c0_31 = arith.constant 0 : index
    %c10_32 = arith.constant 10 : index
    %50 = vector.load %arg1[%c0_30, %c0_31, %c10_32] : memref<2x8x42xf32, #tpu.memory_space<vmem>>, vector<2x8x32xf32>
    %51 = vector.broadcast %49 : f32 to vector<2x8x32xf32>
    %52 = arith.mulf %51, %50 : vector<2x8x32xf32>
    %53 = arith.addf %48, %52 : vector<2x8x32xf32>
    %54 = arith.truncf %53 : vector<2x8x32xf32> to vector<2x8x32xbf16>
    %c0_33 = arith.constant 0 : index
    %c0_34 = arith.constant 0 : index
    %c0_35 = arith.constant 0 : index
    %55 = vector.load %arg2[%c0_33, %c0_34, %c0_35] : memref<2x8x32xbf16, #tpu.memory_space<vmem>>, vector<2x8x32xbf16>
    tpu.vector_store %arg2[%c0_33, %c0_34, %c0_35], %54 {strides = array<i32>} : memref<2x8x32xbf16, #tpu.memory_space<vmem>>, vector<2x8x32xbf16>,
    return
  }
}

</mosaic_0001>

<llo_original>
// kernel: tpu_custom_call.1
$region0: #{tpu_custom_call.1}
  #allocation0 [shape = 'u32[]', space=smem, size = 0x4, offset = 0x4, fixed_abs, tag = 'smem constant byte address 0x4 - core index']
  #allocation1 [shape = 'u32[72,128]{1,0:T(1,128)}', space=vmem, size = 0x9000, scoped, tag = 'internal scratch']
  %s0 = inlined_call_operand.hbm [shape: f32[11], index: 0, kind: input, shape index: {}]
  %s1 = inlined_call_operand.hbm [shape: f32[2,8,42], index: 1, kind: input, shape index: {}]
  %s2 = inlined_call_operand.hbm [shape: bf16[2,8,32], index: 2, kind: output, shape index: {}]
  %s3 = sld [smem:[#allocation0]]
  $region26: #{tpu_custom_call.1} parent=0
    _
  %s5 = ssub.s32 1, %s3
  %s6 = scalar_select 0, %s5, %s3
  $region1: #{tpu_custom_call.1} parent=0
    #allocation2 [shape = 'u8[512]{0}', space=smem, size = 0x200, scoped, tag = 'input window, operand 0, single buffered']
    #allocation3 [shape = 's32[1]{0}', space=sflag, size = 0x4, scoped, tag = 'scoped memory for tpu_custom_call.1']
    #allocation4 [shape = 's32[1]{0}', space=sflag, size = 0x4, scoped, tag = 'scoped memory for tpu_custom_call.1']
    #allocation5 [shape = 's32[1]{0}', space=sflag, size = 0x4, scoped, tag = 'scoped memory for tpu_custom_call.1']
    #allocation6 [shape = 'u8[8192]{0}', space=vmem, size = 0x2000, scoped, tag = 'input window, operand 1, single buffered']
    #allocation7 [shape = 'u8[4096]{0}', space=vmem, size = 0x1000, scoped, tag = 'output window, operand 0, single buffered']
    %7 = vsyncpa [#allocation5], 0
    %8 = vsyncpa [#allocation3], 0
    %9 = vsyncpa [#allocation4], 0
    // Predicated region
    $region2: #{tpu_custom_call.1} parent=1 // pred_check
      _
    $region3: #{tpu_custom_call.1} parent=1 // pred_check_branch
      %11 = sbr.rel (0) target = $region5
    $region4: #{tpu_custom_call.1} parent=1 // pred_region
      %13 = vsyncadd [#allocation5], 0
      %s15 = sshll.u32 %s0, 4
      %s16 = int_to_ptr.hbm [resolvable:$true] %s15
      %18 = dma.hbm_to_smem %s16, 16, [#allocation2], [#allocation5]
    $region5: #{tpu_custom_call.1} parent=1 // pred_fallthru
      _
    // Predicated region
    $region6: #{tpu_custom_call.1} parent=1 // pred_check
      _
    $region7: #{tpu_custom_call.1} parent=1 // pred_check_branch
      %20 = sbr.rel (0) target = $region9
    $region8: #{tpu_custom_call.1} parent=1 // pred_region
      %22 = vsyncadd [#allocation3], 0
      %s23 = sshll.u32 %s1, 4
      %s24 = int_to_ptr.hbm [resolvable:$true] %s23
      %s25 = sshll.u32 [#allocation6], 4
      %s26 = int_to_ptr.vmem [resolvable:$true] %s25
      %31 = dma.hbm_to_vmem [thread:$0]  %s24, 256, %s26, [#allocation3], 128, 128, 8
    $region9: #{tpu_custom_call.1} parent=1 // pred_fallthru
      _
    // Predicated region
    $region10: #{tpu_custom_call.1} parent=1 // pred_check
      _
    $region11: #{tpu_custom_call.1} parent=1 // pred_check_branch
      %33 = sbr.rel (0) target = $region13
    $region12: #{tpu_custom_call.1} parent=1 // pred_region
      %35 = dma.done [#allocation5], 16
    $region13: #{tpu_custom_call.1} parent=1 // pred_fallthru
      _
    // Predicated region
    $region14: #{tpu_custom_call.1} parent=1 // pred_check
      _
    $region15: #{tpu_custom_call.1} parent=1 // pred_check_branch
      %37 = sbr.rel (0) target = $region17
    $region16: #{tpu_custom_call.1} parent=1 // pred_region
      %39 = dma.done [#allocation3], 256
    $region17: #{tpu_custom_call.1} parent=1 // pred_fallthru
      _
    %40 = sfence
    %s41 = sld [smem:[#allocation2]]
    %v42 = vld [vmem:[#allocation6] sm:$0xff]
    %v43 = vld [vmem:[#allocation6 + $0x8] sm:$0xff]
    %v44 = vstv %s41
    %v45 = vmul.f32 %v44, %v42
    %v46 = vmul.f32 %v44, %v43
    %s47 = sld [smem:[#allocation2 + $0x1]]
    %v48 = vstv %s47
    %v49 = vmul.f32 %v48, %v42
    %v50 = vmul.f32 %v48, %v43
    %53 = vrot.lane.b32.xlu0 %v49, 127
    %v54 = vpop.permute.xlu0 %53
    %55 = vrot.lane.b32.xlu0 %v50, 127
    %v56 = vpop.permute.xlu0 %55
    %v59 = vadd.f32 %v45, %v54
    %v60 = vadd.f32 %v46, %v56
    %s61 = sld [smem:[#allocation2 + $0x2]]
    %v62 = vstv %s61
    %v63 = vmul.f32 %v62, %v42
    %v64 = vmul.f32 %v62, %v43
    %67 = vrot.lane.b32.xlu0 %v63, 126
    %v68 = vpop.permute.xlu0 %67
    %69 = vrot.lane.b32.xlu0 %v64, 126
    %v70 = vpop.permute.xlu0 %69
    %v73 = vadd.f32 %v59, %v68
    %v74 = vadd.f32 %v60, %v70
    %s75 = sld [smem:[#allocation2 + $0x3]]
    %v76 = vstv %s75
    %v77 = vmul.f32 %v76, %v42
    %v78 = vmul.f32 %v76, %v43
    %81 = vrot.lane.b32.xlu0 %v77, 125
    %v82 = vpop.permute.xlu0 %81
    %83 = vrot.lane.b32.xlu0 %v78, 125
    %v84 = vpop.permute.xlu0 %83
    %v87 = vadd.f32 %v73, %v82
    %v88 = vadd.f32 %v74, %v84
    %s89 = sld [smem:[#allocation2 + $0x4]]
    %v90 = vstv %s89
    %v91 = vmul.f32 %v90, %v42
    %v92 = vmul.f32 %v90, %v43
    %95 = vrot.lane.b32.xlu0 %v91, 124
    %v96 = vpop.permute.xlu0 %95
    %97 = vrot.lane.b32.xlu0 %v92, 124
    %v98 = vpop.permute.xlu0 %97
    %v101 = vadd.f32 %v87, %v96
    %v102 = vadd.f32 %v88, %v98
    %s103 = sld [smem:[#allocation2 + $0x5]]
    %v104 = vstv %s103
    %v105 = vmul.f32 %v104, %v42
    %v106 = vmul.f32 %v104, %v43
    %109 = vrot.lane.b32.xlu0 %v105, 123
    %v110 = vpop.permute.xlu0 %109
    %111 = vrot.lane.b32.xlu0 %v106, 123
    %v112 = vpop.permute.xlu0 %111
    %v115 = vadd.f32 %v101, %v110
    %v116 = vadd.f32 %v102, %v112
    %s117 = sld [smem:[#allocation2 + $0x6]]
    %v118 = vstv %s117
    %v119 = vmul.f32 %v118, %v42
    %v120 = vmul.f32 %v118, %v43
    %123 = vrot.lane.b32.xlu0 %v119, 122
    %v124 = vpop.permute.xlu0 %123
    %125 = vrot.lane.b32.xlu0 %v120, 122
    %v126 = vpop.permute.xlu0 %125
    %v129 = vadd.f32 %v115, %v124
    %v130 = vadd.f32 %v116, %v126
    %s131 = sld [smem:[#allocation2 + $0x7]]
    %v132 = vstv %s131
    %v133 = vmul.f32 %v132, %v42
    %v134 = vmul.f32 %v132, %v43
    %137 = vrot.lane.b32.xlu0 %v133, 121
    %v138 = vpop.permute.xlu0 %137
    %139 = vrot.lane.b32.xlu0 %v134, 121
    %v140 = vpop.permute.xlu0 %139
    %v143 = vadd.f32 %v129, %v138
    %v144 = vadd.f32 %v130, %v140
    %s145 = sld [smem:[#allocation2 + $0x8]]
    %v146 = vstv %s145
    %v147 = vmul.f32 %v146, %v42
    %v148 = vmul.f32 %v146, %v43
    %151 = vrot.lane.b32.xlu0 %v147, 120
    %v152 = vpop.permute.xlu0 %151
    %153 = vrot.lane.b32.xlu0 %v148, 120
    %v154 = vpop.permute.xlu0 %153
    %v157 = vadd.f32 %v143, %v152
    %v158 = vadd.f32 %v144, %v154
    %s159 = sld [smem:[#allocation2 + $0x9]]
    %v160 = vstv %s159
    %v161 = vmul.f32 %v160, %v42
    %v162 = vmul.f32 %v160, %v43
    %165 = vrot.lane.b32.xlu0 %v161, 119
    %v166 = vpop.permute.xlu0 %165
    %167 = vrot.lane.b32.xlu0 %v162, 119
    %v168 = vpop.permute.xlu0 %167
    %v171 = vadd.f32 %v157, %v166
    %v172 = vadd.f32 %v158, %v168
    %s173 = sld [smem:[#allocation2 + $0xa]]
    %v174 = vstv %s173
    %v175 = vmul.f32 %v174, %v42
    %v176 = vmul.f32 %v174, %v43
    %179 = vrot.lane.b32.xlu0 %v175, 118
    %v180 = vpop.permute.xlu0 %179
    %181 = vrot.lane.b32.xlu0 %v176, 118
    %v182 = vpop.permute.xlu0 %181
    %v185 = vadd.f32 %v171, %v180
    %v186 = vadd.f32 %v172, %v182
    %v187 = vpack.c.bf16 %v185, %v185
    %v188 = vpack.c.bf16 %v186, %v186
    %vm189 = vcmask 257024
    %190 = vst.msk [vmem:[#allocation7] sm:$0xf] %vm189, %v187
    %191 = vst.msk [vmem:[#allocation7 + $0x4] sm:$0xf] %vm189, %v188
    // Predicated region
    $region18: #{tpu_custom_call.1} parent=1 // pred_check
      _
    $region19: #{tpu_custom_call.1} parent=1 // pred_check_branch
      %193 = sbr.rel (0) target = $region21
    $region20: #{tpu_custom_call.1} parent=1 // pred_region
      %195 = vsyncadd [#allocation4], 0
      %s196 = sshll.u32 [#allocation7], 4
      %s197 = int_to_ptr.vmem [resolvable:$true] %s196
      %s198 = sshll.u32 %s2, 4
      %s199 = int_to_ptr.hbm [resolvable:$true] %s198
      %204 = dma.vmem_to_hbm [thread:$0]  %s197, 128, %s199, [#allocation4], 64, 64, 4
    $region21: #{tpu_custom_call.1} parent=1 // pred_fallthru
      _
    // Predicated region
    $region22: #{tpu_custom_call.1} parent=1 // pred_check
      _
    $region23: #{tpu_custom_call.1} parent=1 // pred_check_branch
      %206 = sbr.rel (0) target = $region25
    $region24: #{tpu_custom_call.1} parent=1 // pred_region
      %208 = dma.done [#allocation4], 128
    $region25: #{tpu_custom_call.1} parent=1 // pred_fallthru
      _
    %209 = vsyncpa [#allocation3], 1
    %210 = vsyncpa [#allocation4], 1
    %211 = vsyncpa [#allocation5], 1

</llo_original>
